<compile_context>
chip_gen: v7x
topology: tpu7x:2x2x1
jax: 0.10.0
libtpu: 0.0.40
codegen_flags: <defaults>
</compile_context>

<pallas_src>
import math

import jax
import jax.numpy as jnp
from jax.experimental import pallas as pl
from jax.experimental.pallas import tpu as pltpu

_STATE_DIM = 4
_OUT_DIM = 4


def _round_up(x, m):
    return (x + m - 1) // m * m


def _cdiv(a, b):
    return -(-a // b)


# ----------------------------- Pallas kernel ------------------------------ #
def _pinn_mlp_kernel(t_ref, x_ref, w1s_ref, w1t_ref, b1_ref,
                     w2_ref, b2_ref, w3_ref, b3_ref, w4_ref, b4_ref, o_ref):
    # t_ref : SMEM (1,1) scalar time                    (f32)
    # x_ref : (TB, 4) state tile                        (f32)
    # w1s   : (4, H)  w1t: (1, H)  b1/b2/b3: (1, H)     (f32)
    # w2/w3 : (H, H)                                    (bf16)
    # w4    : (H, 4)   b4: (1, 4)                       (bf16 / f32)
    # o_ref : (TB, 4) output tile                       (f32)
    t = t_ref[0, 0]
    x = x_ref[...]

    # ---- layer 1 on the VPU: sum_k x[:,k] * W1[k,:] + t * W1[4,:] + b1 ----
    # (a K=4 contraction is a poor fit for the MXU; rank-1 updates keep the
    #  MXU free for the three H-wide dots below.)
    acc = x[:, 0:1] * w1s_ref[0:1, :]
    for k in range(1, _STATE_DIM):
        acc = acc + x[:, k:k + 1] * w1s_ref[k:k + 1, :]
    h = jnp.tanh(acc + t * w1t_ref[...] + b1_ref[...])

    # ---- layers 2/3/4 on the MXU (bf16 inputs, f32 accumulation) ----------
    h = jnp.tanh(
        jnp.dot(h.astype(jnp.bfloat16), w2_ref[...],
                preferred_element_type=jnp.float32) + b2_ref[...])
    h = jnp.tanh(
        jnp.dot(h.astype(jnp.bfloat16), w3_ref[...],
                preferred_element_type=jnp.float32) + b3_ref[...])
    y = jnp.dot(h.astype(jnp.bfloat16), w4_ref[...],
                preferred_element_type=jnp.float32) + b4_ref[...]
    o_ref[...] = y.astype(o_ref.dtype)


# ------------------------------ wrapper ------------------------------------ #
def simple_pinn_odefunc(t, state, params, *, block_b=1024):
    """Pallas equivalent of SimplePINN_ODEFunc.forward(t, state) -> (B, 4)."""
    w1s, w1t, b1, w2, b2, w3, b3, w4, b4 = params
    B = state.shape[0]
    H = w2.shape[0]

    # Spread the batch evenly over the grid steps (minimizes pad waste); tile
    # rounded to 16 rows (sublane-aligned for both f32 and bf16 activations).
    n_steps = max(1, _cdiv(B, block_b))
    tb = _round_up(_cdiv(B, n_steps), 16)
    bp = _round_up(B, tb)
    if bp != B:
        state = jnp.pad(state, ((0, bp - B), (0, 0)))

    t_arr = jnp.asarray(t, dtype=jnp.float32).reshape(1, 1)

    const = lambda i: (0, 0)  # weights: same block every step -> VMEM-resident
    out = pl.pallas_call(
        _pinn_mlp_kernel,
        out_shape=jax.ShapeDtypeStruct((bp, _OUT_DIM), state.dtype),
        grid=(bp // tb,),
        in_specs=[
            pl.BlockSpec(memory_space=pltpu.MemorySpace.SMEM),   # t (scalar)
            pl.BlockSpec((tb, _STATE_DIM), lambda i: (i, 0)),    # state tile
            pl.BlockSpec((_STATE_DIM, H), const),                # w1 (state part)
            pl.BlockSpec((1, H), const),                         # w1 (time row)
            pl.BlockSpec((1, H), const),                         # b1
            pl.BlockSpec((H, H), const),                         # w2 (bf16)
            pl.BlockSpec((1, H), const),                         # b2
            pl.BlockSpec((H, H), const),                         # w3 (bf16)
            pl.BlockSpec((1, H), const),                         # b3
            pl.BlockSpec((H, _OUT_DIM), const),                  # w4 (bf16)
            pl.BlockSpec((1, _OUT_DIM), const),                  # b4
        ],
        out_specs=pl.BlockSpec((tb, _OUT_DIM), lambda i: (i, 0)),
        compiler_params=pltpu.CompilerParams(
            dimension_semantics=("parallel",)),
    )(t_arr, state, w1s, w1t, b1, w2, b2, w3, b3, w4, b4)

    return out[:B, :]


# ------------------------- deterministic init ------------------------------ #
def _xavier_uniform(key, fan_in, fan_out, gain, dtype=jnp.float32):
    # matches torch.nn.init.xavier_uniform_ (bound = gain*sqrt(6/(fan_in+fan_out)))
    bound = gain * math.sqrt(6.0 / (fan_in + fan_out))
    return jax.random.uniform(key, (fan_in, fan_out), dtype=dtype,
                              minval=-bound, maxval=bound)


def init_params(key, h_dim=128):
    # gain for 'tanh' in torch.nn.init.calculate_gain is 5/3; biases are zero.
    gain = 5.0 / 3.0
    ks = jax.random.split(key, 4)
    w1 = _xavier_uniform(ks[0], 5, h_dim, gain)                  # (5, H) f32
    w1s, w1t = w1[:_STATE_DIM], w1[_STATE_DIM:_STATE_DIM + 1]    # (4,H), (1,H)
    b1 = jnp.zeros((1, h_dim), jnp.float32)
    # H-wide weights live in bf16 (MXU-native input dtype); biases stay f32.
    w2 = _xavier_uniform(ks[1], h_dim, h_dim, gain).astype(jnp.bfloat16)
    b2 = jnp.zeros((1, h_dim), jnp.float32)
    w3 = _xavier_uniform(ks[2], h_dim, h_dim, gain).astype(jnp.bfloat16)
    b3 = jnp.zeros((1, h_dim), jnp.float32)
    w4 = _xavier_uniform(ks[3], h_dim, _OUT_DIM, gain).astype(jnp.bfloat16)
    b4 = jnp.zeros((1, _OUT_DIM), jnp.float32)
    return (w1s, w1t, b1, w2, b2, w3, b3, w4, b4)


# ------------------------------ reference ---------------------------------- #
def _ref_forward(t, state, params):
    """Pure-JAX reference with the original concat semantics and the same
    bf16-input / f32-accumulate matmul precision as the kernel."""
    w1s, w1t, b1, w2, b2, w3, b3, w4, b4 = params
    w1 = jnp.concatenate([w1s, w1t], axis=0)                      # (5, H) f32
    x = jnp.concatenate(
        [state, jnp.full((state.shape[0], 1), t, dtype=state.dtype)], axis=1)
    h = jnp.tanh(x @ w1 + b1)
    h = jnp.tanh(jnp.dot(h.astype(jnp.bfloat16), w2,
                         preferred_element_type=jnp.float32) + b2)
    h = jnp.tanh(jnp.dot(h.astype(jnp.bfloat16), w3,
                         preferred_element_type=jnp.float32) + b3)
    return jnp.dot(h.astype(jnp.bfloat16), w4,
                   preferred_element_type=jnp.float32) + b4


if __name__ == "__main__":
    key = jax.random.PRNGKey(0)
    k_param, k_state = jax.random.split(key)

    h_dim = 128         # small but lane-aligned (module default is 256)
    batch = 8
    params = init_params(k_param, h_dim=h_dim)

    state = jax.random.normal(k_state, (batch, _STATE_DIM), dtype=jnp.float32)
    t = jnp.float32(0.5)

    out = simple_pinn_odefunc(t, state, params)
    out = jax.block_until_ready(out)

    ref = _ref_forward(t, state, params)
    assert out.shape == (batch, _OUT_DIM)
    max_err = float(jnp.max(jnp.abs(out - ref)))
    assert jnp.allclose(out, ref, atol=1e-2, rtol=1e-2), ("max abs diff", max_err)

    print("KERNEL_OK")
</pallas_src>

<mosaic_0001>
module attributes {stable_mosaic.version = 11 : i64} {
  func.func @_pinn_mlp_kernel(%arg0: i32, %arg1: memref<1x1xf32, #tpu.memory_space<smem>>, %arg2: memref<16x4xf32, #tpu.memory_space<vmem>>, %arg3: memref<4x128xf32, #tpu.memory_space<vmem>>, %arg4: memref<1x128xf32, #tpu.memory_space<vmem>>, %arg5: memref<1x128xf32, #tpu.memory_space<vmem>>, %arg6: memref<128x128xbf16, #tpu.memory_space<vmem>>, %arg7: memref<1x128xf32, #tpu.memory_space<vmem>>, %arg8: memref<128x128xbf16, #tpu.memory_space<vmem>>, %arg9: memref<1x128xf32, #tpu.memory_space<vmem>>, %arg10: memref<128x4xbf16, #tpu.memory_space<vmem>>, %arg11: memref<1x4xf32, #tpu.memory_space<vmem>>, %arg12: memref<16x4xf32, #tpu.memory_space<vmem>>) attributes {dimension_semantics = [#tpu.dimension_semantics<parallel>], iteration_bounds = array<i64: 1>, scalar_prefetch = 0 : i64, scratch_operands = 0 : i64, tpu.core_type = #tpu.core_type<tc>, window_params = [{transform_indices = @transform_0, window_bounds = array<i64: 1, 1>}, {transform_indices = @transform_1, window_bounds = array<i64: 16, 4>}, {pipeline_mode = #tpu.pipeline_mode<synchronous>, transform_indices = @transform_2, window_bounds = array<i64: 4, 128>}, {pipeline_mode = #tpu.pipeline_mode<synchronous>, transform_indices = @transform_3, window_bounds = array<i64: 1, 128>}, {pipeline_mode = #tpu.pipeline_mode<synchronous>, transform_indices = @transform_4, window_bounds = array<i64: 1, 128>}, {pipeline_mode = #tpu.pipeline_mode<synchronous>, transform_indices = @transform_5, window_bounds = array<i64: 128, 128>}, {pipeline_mode = #tpu.pipeline_mode<synchronous>, transform_indices = @transform_6, window_bounds = array<i64: 1, 128>}, {pipeline_mode = #tpu.pipeline_mode<synchronous>, transform_indices = @transform_7, window_bounds = array<i64: 128, 128>}, {pipeline_mode = #tpu.pipeline_mode<synchronous>, transform_indices = @transform_8, window_bounds = array<i64: 1, 128>}, {pipeline_mode = #tpu.pipeline_mode<synchronous>, transform_indices = @transform_9, window_bounds = array<i64: 128, 4>}, {pipeline_mode = #tpu.pipeline_mode<synchronous>, transform_indices = @transform_10, window_bounds = array<i64: 1, 4>}, {transform_indices = @transform_11, window_bounds = array<i64: 16, 4>}]} {
    %c0 = arith.constant 0 : index
    %c0_0 = arith.constant 0 : index
    %0 = memref.load %arg1[%c0, %c0_0] : memref<1x1xf32, #tpu.memory_space<smem>>
    %c0_1 = arith.constant 0 : index
    %c0_2 = arith.constant 0 : index
    %1 = vector.load %arg2[%c0_1, %c0_2] : memref<16x4xf32, #tpu.memory_space<vmem>>, vector<16x4xf32>
    %2 = vector.extract_strided_slice %1 {offsets = [0, 0], sizes = [16, 1], strides = [1, 1]} : vector<16x4xf32> to vector<16x1xf32>
    %c0_3 = arith.constant 0 : index
    %c0_4 = arith.constant 0 : index
    %3 = vector.load %arg3[%c0_3, %c0_4] : memref<4x128xf32, #tpu.memory_space<vmem>>, vector<1x128xf32>
    %4 = vector.broadcast %2 : vector<16x1xf32> to vector<16x128xf32>
    %5 = vector.broadcast %3 : vector<1x128xf32> to vector<16x128xf32>
    %6 = arith.mulf %4, %5 : vector<16x128xf32>
    %7 = vector.extract_strided_slice %1 {offsets = [0, 1], sizes = [16, 1], strides = [1, 1]} : vector<16x4xf32> to vector<16x1xf32>
    %c1 = arith.constant 1 : index
    %c0_5 = arith.constant 0 : index
    %8 = vector.load %arg3[%c1, %c0_5] : memref<4x128xf32, #tpu.memory_space<vmem>>, vector<1x128xf32>
    %9 = vector.broadcast %7 : vector<16x1xf32> to vector<16x128xf32>
    %10 = vector.broadcast %8 : vector<1x128xf32> to vector<16x128xf32>
    %11 = arith.mulf %9, %10 : vector<16x128xf32>
    %12 = arith.addf %6, %11 : vector<16x128xf32>
    %13 = vector.extract_strided_slice %1 {offsets = [0, 2], sizes = [16, 1], strides = [1, 1]} : vector<16x4xf32> to vector<16x1xf32>
    %c2 = arith.constant 2 : index
    %c0_6 = arith.constant 0 : index
    %14 = vector.load %arg3[%c2, %c0_6] : memref<4x128xf32, #tpu.memory_space<vmem>>, vector<1x128xf32>
    %15 = vector.broadcast %13 : vector<16x1xf32> to vector<16x128xf32>
    %16 = vector.broadcast %14 : vector<1x128xf32> to vector<16x128xf32>
    %17 = arith.mulf %15, %16 : vector<16x128xf32>
    %18 = arith.addf %12, %17 : vector<16x128xf32>
    %19 = vector.extract_strided_slice %1 {offsets = [0, 3], sizes = [16, 1], strides = [1, 1]} : vector<16x4xf32> to vector<16x1xf32>
    %c3 = arith.constant 3 : index
    %c0_7 = arith.constant 0 : index
    %20 = vector.load %arg3[%c3, %c0_7] : memref<4x128xf32, #tpu.memory_space<vmem>>, vector<1x128xf32>
    %21 = vector.broadcast %19 : vector<16x1xf32> to vector<16x128xf32>
    %22 = vector.broadcast %20 : vector<1x128xf32> to vector<16x128xf32>
    %23 = arith.mulf %21, %22 : vector<16x128xf32>
    %24 = arith.addf %18, %23 : vector<16x128xf32>
    %c0_8 = arith.constant 0 : index
    %c0_9 = arith.constant 0 : index
    %25 = vector.load %arg4[%c0_8, %c0_9] : memref<1x128xf32, #tpu.memory_space<vmem>>, vector<1x128xf32>
    %26 = vector.broadcast %0 : f32 to vector<1x128xf32>
    %27 = arith.mulf %26, %25 : vector<1x128xf32>
    %28 = vector.broadcast %27 : vector<1x128xf32> to vector<16x128xf32>
    %29 = arith.addf %24, %28 : vector<16x128xf32>
    %c0_10 = arith.constant 0 : index
    %c0_11 = arith.constant 0 : index
    %30 = vector.load %arg5[%c0_10, %c0_11] : memref<1x128xf32, #tpu.memory_space<vmem>>, vector<1x128xf32>
    %31 = vector.broadcast %30 : vector<1x128xf32> to vector<16x128xf32>
    %32 = arith.addf %29, %31 : vector<16x128xf32>
    %33 = math.tanh %32 : vector<16x128xf32>
    %34 = arith.truncf %33 : vector<16x128xf32> to vector<16x128xbf16>
    %c0_12 = arith.constant 0 : index
    %c0_13 = arith.constant 0 : index
    %35 = vector.load %arg6[%c0_12, %c0_13] : memref<128x128xbf16, #tpu.memory_space<vmem>>, vector<128x128xbf16>
    %cst = arith.constant dense<0.000000e+00> : vector<16x128xf32>
    %36 = tpu.matmul %34, %35, %cst {dimension_numbers = #tpu.dot_dimension_numbers<[1], [0], [0], [1], [0, 0, 1, 1], [], []>} : vector<16x128xbf16>, vector<128x128xbf16>, vector<16x128xf32> -> vector<16x128xf32>
    %c0_14 = arith.constant 0 : index
    %c0_15 = arith.constant 0 : index
    %37 = vector.load %arg7[%c0_14, %c0_15] : memref<1x128xf32, #tpu.memory_space<vmem>>, vector<1x128xf32>
    %38 = vector.broadcast %37 : vector<1x128xf32> to vector<16x128xf32>
    %39 = arith.addf %36, %38 : vector<16x128xf32>
    %40 = math.tanh %39 : vector<16x128xf32>
    %41 = arith.truncf %40 : vector<16x128xf32> to vector<16x128xbf16>
    %c0_16 = arith.constant 0 : index
    %c0_17 = arith.constant 0 : index
    %42 = vector.load %arg8[%c0_16, %c0_17] : memref<128x128xbf16, #tpu.memory_space<vmem>>, vector<128x128xbf16>
    %cst_18 = arith.constant dense<0.000000e+00> : vector<16x128xf32>
    %43 = tpu.matmul %41, %42, %cst_18 {dimension_numbers = #tpu.dot_dimension_numbers<[1], [0], [0], [1], [0, 0, 1, 1], [], []>} : vector<16x128xbf16>, vector<128x128xbf16>, vector<16x128xf32> -> vector<16x128xf32>
    %c0_19 = arith.constant 0 : index
    %c0_20 = arith.constant 0 : index
    %44 = vector.load %arg9[%c0_19, %c0_20] : memref<1x128xf32, #tpu.memory_space<vmem>>, vector<1x128xf32>
    %45 = vector.broadcast %44 : vector<1x128xf32> to vector<16x128xf32>
    %46 = arith.addf %43, %45 : vector<16x128xf32>
    %47 = math.tanh %46 : vector<16x128xf32>
    %48 = arith.truncf %47 : vector<16x128xf32> to vector<16x128xbf16>
    %c0_21 = arith.constant 0 : index
    %c0_22 = arith.constant 0 : index
    %49 = vector.load %arg10[%c0_21, %c0_22] : memref<128x4xbf16, #tpu.memory_space<vmem>>, vector<128x4xbf16>
    %cst_23 = arith.constant dense<0.000000e+00> : vector<16x4xf32>
    %50 = tpu.matmul %48, %49, %cst_23 {dimension_numbers = #tpu.dot_dimension_numbers<[1], [0], [0], [1], [0, 0, 1, 1], [], []>} : vector<16x128xbf16>, vector<128x4xbf16>, vector<16x4xf32> -> vector<16x4xf32>
    %c0_24 = arith.constant 0 : index
    %c0_25 = arith.constant 0 : index
    %51 = vector.load %arg11[%c0_24, %c0_25] : memref<1x4xf32, #tpu.memory_space<vmem>>, vector<1x4xf32>
    %52 = vector.broadcast %51 : vector<1x4xf32> to vector<16x4xf32>
    %53 = arith.addf %50, %52 : vector<16x4xf32>
    %c0_26 = arith.constant 0 : index
    %c0_27 = arith.constant 0 : index
    %54 = vector.load %arg12[%c0_26, %c0_27] : memref<16x4xf32, #tpu.memory_space<vmem>>, vector<16x4xf32>
    tpu.vector_store %arg12[%c0_26, %c0_27], %53 {strides = array<i32>} : memref<16x4xf32, #tpu.memory_space<vmem>>, vector<16x4xf32>,
    return
  }
  func.func @transform_0(%arg0: i32) -> (i32, i32) {
    %c0_i32 = arith.constant 0 : i32
    %c0_i32_0 = arith.constant 0 : i32
    %c0_i32_1 = arith.constant 0 : i32
    return %c0_i32, %c0_i32_0 : i32, i32
  }
  func.func @transform_1(%arg0: i32) -> (i32, i32) {
    %c0_i32 = arith.constant 0 : i32
    %c0_i32_0 = arith.constant 0 : i32
    return %arg0, %c0_i32 : i32, i32
  }
  func.func @transform_2(%arg0: i32) -> (i32, i32) {
    %c0_i32 = arith.constant 0 : i32
    %c0_i32_0 = arith.constant 0 : i32
    %c0_i32_1 = arith.constant 0 : i32
    return %c0_i32, %c0_i32_0 : i32, i32
  }
  func.func @transform_3(%arg0: i32) -> (i32, i32) {
    %c0_i32 = arith.constant 0 : i32
    %c0_i32_0 = arith.constant 0 : i32
    %c0_i32_1 = arith.constant 0 : i32
    return %c0_i32, %c0_i32_0 : i32, i32
  }
  func.func @transform_4(%arg0: i32) -> (i32, i32) {
    %c0_i32 = arith.constant 0 : i32
    %c0_i32_0 = arith.constant 0 : i32
    %c0_i32_1 = arith.constant 0 : i32
    return %c0_i32, %c0_i32_0 : i32, i32
  }
  func.func @transform_5(%arg0: i32) -> (i32, i32) {
    %c0_i32 = arith.constant 0 : i32
    %c0_i32_0 = arith.constant 0 : i32
    %c0_i32_1 = arith.constant 0 : i32
    return %c0_i32, %c0_i32_0 : i32, i32
  }
  func.func @transform_6(%arg0: i32) -> (i32, i32) {
    %c0_i32 = arith.constant 0 : i32
    %c0_i32_0 = arith.constant 0 : i32
    %c0_i32_1 = arith.constant 0 : i32
    return %c0_i32, %c0_i32_0 : i32, i32
  }
  func.func @transform_7(%arg0: i32) -> (i32, i32) {
    %c0_i32 = arith.constant 0 : i32
    %c0_i32_0 = arith.constant 0 : i32
    %c0_i32_1 = arith.constant 0 : i32
    return %c0_i32, %c0_i32_0 : i32, i32
  }
  func.func @transform_8(%arg0: i32) -> (i32, i32) {
    %c0_i32 = arith.constant 0 : i32
    %c0_i32_0 = arith.constant 0 : i32
    %c0_i32_1 = arith.constant 0 : i32
    return %c0_i32, %c0_i32_0 : i32, i32
  }
  func.func @transform_9(%arg0: i32) -> (i32, i32) {
    %c0_i32 = arith.constant 0 : i32
    %c0_i32_0 = arith.constant 0 : i32
    %c0_i32_1 = arith.constant 0 : i32
    return %c0_i32, %c0_i32_0 : i32, i32
  }
  func.func @transform_10(%arg0: i32) -> (i32, i32) {
    %c0_i32 = arith.constant 0 : i32
    %c0_i32_0 = arith.constant 0 : i32
    %c0_i32_1 = arith.constant 0 : i32
    return %c0_i32, %c0_i32_0 : i32, i32
  }
  func.func @transform_11(%arg0: i32) -> (i32, i32) {
    %c0_i32 = arith.constant 0 : i32
    %c0_i32_0 = arith.constant 0 : i32
    return %arg0, %c0_i32 : i32, i32
  }
}

</mosaic_0001>

<llo_original>
// kernel: tpu_custom_call.1
$region0: #{tpu_custom_call.1}
  #allocation0 [shape = 'u32[]', space=smem, size = 0x4, offset = 0x4, fixed_abs, tag = 'smem constant byte address 0x4 - core index']
  #allocation1 [shape = 'u32[144,128]{1,0:T(1,128)}', space=vmem, size = 0x12000, scoped, tag = 'internal scratch']
  #allocation2 [shape = 'f32[1,1]{1,0:T(1,128)S(6)}', space=smem, size = 0x200, scoped, tag = 'scoped memory for tpu_custom_call.1']
  %s0 = inlined_call_operand.<no memory space> [shape: f32[1,1], index: 0, kind: input, shape index: {}]
  %s1 = inlined_call_operand.vmem [shape: f32[16,4], index: 1, kind: input, shape index: {}]
  %s2 = inlined_call_operand.vmem [shape: f32[4,128], index: 2, kind: input, shape index: {}]
  %s3 = inlined_call_operand.vmem [shape: f32[1,128], index: 3, kind: input, shape index: {}]
  %s4 = inlined_call_operand.vmem [shape: f32[1,128], index: 4, kind: input, shape index: {}]
  %s5 = inlined_call_operand.vmem [shape: bf16[128,128], index: 5, kind: input, shape index: {}]
  %s6 = inlined_call_operand.vmem [shape: f32[1,128], index: 6, kind: input, shape index: {}]
  %s7 = inlined_call_operand.hbm [shape: bf16[128,128], index: 7, kind: input, shape index: {}]
  %s8 = inlined_call_operand.vmem [shape: f32[1,128], index: 8, kind: input, shape index: {}]
  %s9 = inlined_call_operand.vmem [shape: bf16[128,4], index: 9, kind: input, shape index: {}]
  %s10 = inlined_call_operand.vmem [shape: f32[1,4], index: 10, kind: input, shape index: {}]
  %s11 = inlined_call_operand.vmem [shape: f32[16,4], index: 11, kind: output, shape index: {}]
  %s12 = sld [smem:[#allocation0]]
  $region58: #{tpu_custom_call.1} parent=0
    _
  %s14 = ssub.s32 1, %s12
  %s15 = scalar_select 0, %s14, %s12
  %16 = sst [smem:[#allocation2]] %s0
  $region1: #{tpu_custom_call.1} parent=0
    #allocation3 [shape = 'u8[32768]{0}', space=vmem, size = 0x8000, scoped, tag = 'input window, operand 7, single buffered']
    #allocation4 [shape = 's32[1]{0}', space=sflag, size = 0x4, scoped, tag = 'scoped memory for tpu_custom_call.1']
    %17 = vsyncpa [#allocation4], 0
    // Predicated region
    $region2: #{tpu_custom_call.1} parent=1 // pred_check
      _
    $region3: #{tpu_custom_call.1} parent=1 // pred_check_branch
      %19 = sbr.rel (0) target = $region5
    $region4: #{tpu_custom_call.1} parent=1 // pred_region
      _
    $region5: #{tpu_custom_call.1} parent=1 // pred_fallthru
      _
    // Predicated region
    $region6: #{tpu_custom_call.1} parent=1 // pred_check
      _
    $region7: #{tpu_custom_call.1} parent=1 // pred_check_branch
      %21 = sbr.rel (0) target = $region9
    $region8: #{tpu_custom_call.1} parent=1 // pred_region
      _
    $region9: #{tpu_custom_call.1} parent=1 // pred_fallthru
      _
    // Predicated region
    $region10: #{tpu_custom_call.1} parent=1 // pred_check
      _
    $region11: #{tpu_custom_call.1} parent=1 // pred_check_branch
      %23 = sbr.rel (0) target = $region13
    $region12: #{tpu_custom_call.1} parent=1 // pred_region
      _
    $region13: #{tpu_custom_call.1} parent=1 // pred_fallthru
      _
    // Predicated region
    $region14: #{tpu_custom_call.1} parent=1 // pred_check
      _
    $region15: #{tpu_custom_call.1} parent=1 // pred_check_branch
      %25 = sbr.rel (0) target = $region17
    $region16: #{tpu_custom_call.1} parent=1 // pred_region
      _
    $region17: #{tpu_custom_call.1} parent=1 // pred_fallthru
      _
    // Predicated region
    $region18: #{tpu_custom_call.1} parent=1 // pred_check
      _
    $region19: #{tpu_custom_call.1} parent=1 // pred_check_branch
      %27 = sbr.rel (0) target = $region21
    $region20: #{tpu_custom_call.1} parent=1 // pred_region
      _
    $region21: #{tpu_custom_call.1} parent=1 // pred_fallthru
      _
    // Predicated region
    $region22: #{tpu_custom_call.1} parent=1 // pred_check
      _
    $region23: #{tpu_custom_call.1} parent=1 // pred_check_branch
      %29 = sbr.rel (0) target = $region25
    $region24: #{tpu_custom_call.1} parent=1 // pred_region
      _
    $region25: #{tpu_custom_call.1} parent=1 // pred_fallthru
      _
    // Predicated region
    $region26: #{tpu_custom_call.1} parent=1 // pred_check
      _
    $region27: #{tpu_custom_call.1} parent=1 // pred_check_branch
      %31 = sbr.rel (0) target = $region29
    $region28: #{tpu_custom_call.1} parent=1 // pred_region
      _
    $region29: #{tpu_custom_call.1} parent=1 // pred_fallthru
      _
    // Predicated region
    $region30: #{tpu_custom_call.1} parent=1 // pred_check
      _
    $region31: #{tpu_custom_call.1} parent=1 // pred_check_branch
      %33 = sbr.rel (0) target = $region33
    $region32: #{tpu_custom_call.1} parent=1 // pred_region
      %s35 = ssub.s32 1024, 1024
      %36 = vsyncadd [#allocation4], %s35
      %s37 = sshll.u32 [#allocation3], 4
      %s38 = int_to_ptr.vmem [resolvable:$true] %s37
      %43 = dma.hbm_to_vmem [thread:$0]  %s7, 1024, %s38, [#allocation4], 64, 64, 4
    $region33: #{tpu_custom_call.1} parent=1 // pred_fallthru
      _
    // Predicated region
    $region34: #{tpu_custom_call.1} parent=1 // pred_check
      _
    $region35: #{tpu_custom_call.1} parent=1 // pred_check_branch
      %45 = sbr.rel (0) target = $region37
    $region36: #{tpu_custom_call.1} parent=1 // pred_region
      _
    $region37: #{tpu_custom_call.1} parent=1 // pred_fallthru
      _
    // Predicated region
    $region38: #{tpu_custom_call.1} parent=1 // pred_check
      _
    $region39: #{tpu_custom_call.1} parent=1 // pred_check_branch
      %47 = sbr.rel (0) target = $region41
    $region40: #{tpu_custom_call.1} parent=1 // pred_region
      _
    $region41: #{tpu_custom_call.1} parent=1 // pred_fallthru
      _
    // Predicated region
    $region42: #{tpu_custom_call.1} parent=1 // pred_check
      _
    $region43: #{tpu_custom_call.1} parent=1 // pred_check_branch
      %49 = sbr.rel (0) target = $region45
    $region44: #{tpu_custom_call.1} parent=1 // pred_region
      _
    $region45: #{tpu_custom_call.1} parent=1 // pred_fallthru
      _
    // Predicated region
    $region46: #{tpu_custom_call.1} parent=1 // pred_check
      _
    $region47: #{tpu_custom_call.1} parent=1 // pred_check_branch
      %51 = sbr.rel (0) target = $region49
    $region48: #{tpu_custom_call.1} parent=1 // pred_region
      %52 = dma.done [#allocation4], 1024
    $region49: #{tpu_custom_call.1} parent=1 // pred_fallthru
      _
    %s54 = sld [smem:[#allocation2]]
    %v55 = vld [vmem:[%s1] sm:$0xff]
    %v56 = vld [vmem:[%s1 + $0x8] sm:$0xff]
    %v57 = vld [vmem:[%s2] sm:$0x1]
    %59 = vset.pattern.permute.xlu0 0
    %60 = vperm.xlu0 %59, %v55
    %v61 = vpop.permute.xlu0 %60
    %64 = vset.pattern.permute.xlu0 0
    %65 = vperm.xlu0 %64, %v56
    %v66 = vpop.permute.xlu0 %65
    %v68 = vlaneseq
    %v69 = vshrl.u32 %v68, 7
    %v70 = vsub.s32 0, %v69
    %v71 = vrot.slane %v57, %v70
    %v72 = vmul.f32 %v61, %v71
    %v73 = vmul.f32 %v66, %v71
    %v74 = vld [vmem:[%s2 + $0x1] sm:$0x1]
    %75 = vset.pattern.permute.xlu0 1
    %76 = vperm.xlu0 %75, %v55
    %v77 = vpop.permute.xlu0 %76
    %79 = vset.pattern.permute.xlu0 1
    %80 = vperm.xlu0 %79, %v56
    %v81 = vpop.permute.xlu0 %80
    %v83 = vlaneseq
    %v84 = vshrl.u32 %v83, 7
    %v85 = vsub.s32 0, %v84
    %v86 = vrot.slane %v74, %v85
    %v87 = vmul.f32 %v77, %v86
    %v88 = vmul.f32 %v81, %v86
    %v89 = vadd.f32 %v72, %v87
    %v90 = vadd.f32 %v73, %v88
    %v91 = vld [vmem:[%s2 + $0x2] sm:$0x1]
    %92 = vset.pattern.permute.xlu0 2
    %93 = vperm.xlu0 %92, %v55
    %v94 = vpop.permute.xlu0 %93
    %96 = vset.pattern.permute.xlu0 2
    %97 = vperm.xlu0 %96, %v56
    %v98 = vpop.permute.xlu0 %97
    %v100 = vlaneseq
    %v101 = vshrl.u32 %v100, 7
    %v102 = vsub.s32 0, %v101
    %v103 = vrot.slane %v91, %v102
    %v104 = vmul.f32 %v94, %v103
    %v105 = vmul.f32 %v98, %v103
    %v106 = vadd.f32 %v89, %v104
    %v107 = vadd.f32 %v90, %v105
    %v108 = vld [vmem:[%s2 + $0x3] sm:$0x1]
    %109 = vset.pattern.permute.xlu0 3
    %110 = vperm.xlu0 %109, %v55
    %v111 = vpop.permute.xlu0 %110
    %113 = vset.pattern.permute.xlu0 3
    %114 = vperm.xlu0 %113, %v56
    %v115 = vpop.permute.xlu0 %114
    %v117 = vlaneseq
    %v118 = vshrl.u32 %v117, 7
    %v119 = vsub.s32 0, %v118
    %v120 = vrot.slane %v108, %v119
    %v121 = vmul.f32 %v111, %v120
    %v122 = vmul.f32 %v115, %v120
    %v123 = vadd.f32 %v106, %v121
    %v124 = vadd.f32 %v107, %v122
    %v125 = vld [vmem:[%s3] sm:$0x1]
    %v126 = vstv %s54
    %v127 = vmul.f32 %v126, %v125
    %v129 = vlaneseq
    %v130 = vshrl.u32 %v129, 7
    %v131 = vsub.s32 0, %v130
    %v132 = vrot.slane %v127, %v131
    %v134 = vadd.f32 %v123, %v132
    %v135 = vadd.f32 %v124, %v132
    %v136 = vld [vmem:[%s4] sm:$0x1]
    %v138 = vlaneseq
    %v139 = vshrl.u32 %v138, 7
    %v140 = vsub.s32 0, %v139
    %v141 = vrot.slane %v136, %v140
    %v143 = vadd.f32 %v134, %v141
    %v144 = vadd.f32 %v135, %v141
    %v145 = vtanh.pop %v143
    %v146 = vtanh.pop %v144
    %v147 = vpack.c.bf16 %v146, %v145
    %v148 = vld [vmem:[%s5] sm:$0xf]
    %v149 = vld [vmem:[%s5 + $0x4] sm:$0xf]
    %v150 = vld [vmem:[%s5 + $0x8] sm:$0xf]
    %v151 = vld [vmem:[%s5 + $0xc] sm:$0xf]
    %v152 = vld [vmem:[%s5 + $0x10] sm:$0xf]
    %v153 = vld [vmem:[%s5 + $0x14] sm:$0xf]
    %v154 = vld [vmem:[%s5 + $0x18] sm:$0xf]
    %v155 = vld [vmem:[%s5 + $0x1c] sm:$0xf]
    %v156 = vld [vmem:[%s5 + $0x20] sm:$0xf]
    %v157 = vld [vmem:[%s5 + $0x24] sm:$0xf]
    %v158 = vld [vmem:[%s5 + $0x28] sm:$0xf]
    %v159 = vld [vmem:[%s5 + $0x2c] sm:$0xf]
    %v160 = vld [vmem:[%s5 + $0x30] sm:$0xf]
    %v161 = vld [vmem:[%s5 + $0x34] sm:$0xf]
    %v162 = vld [vmem:[%s5 + $0x38] sm:$0xf]
    %v163 = vld [vmem:[%s5 + $0x3c] sm:$0xf]
    %v164 = vld [vmem:[%s6] sm:$0x1]
    %v166 = vlaneseq
    %v167 = vshrl.u32 %v166, 7
    %v168 = vsub.s32 0, %v167
    %v169 = vrot.slane %v164, %v168
    %v187 = vunpack.c.l.b16 %v148
    %v188 = vunpack.c.l.b16 %v149
    %v189 = vunpack.c.l.b16 %v150
    %v190 = vunpack.c.l.b16 %v151
    %v191 = vunpack.c.l.b16 %v152
    %v192 = vunpack.c.l.b16 %v153
    %v193 = vunpack.c.l.b16 %v154
    %v194 = vunpack.c.l.b16 %v155
    %v195 = vunpack.c.l.b16 %v156
    %v196 = vunpack.c.l.b16 %v157
    %v197 = vunpack.c.l.b16 %v158
    %v198 = vunpack.c.l.b16 %v159
    %v199 = vunpack.c.l.b16 %v160
    %v200 = vunpack.c.l.b16 %v161
    %v201 = vunpack.c.l.b16 %v162
    %v202 = vunpack.c.l.b16 %v163
    %v203 = vpack.c.b16 %v188, %v187
    %v204 = vpack.c.b16 %v190, %v189
    %v205 = vpack.c.b16 %v192, %v191
    %v206 = vpack.c.b16 %v194, %v193
    %v207 = vpack.c.b16 %v196, %v195
    %v208 = vpack.c.b16 %v198, %v197
    %v209 = vpack.c.b16 %v200, %v199
    %v210 = vpack.c.b16 %v202, %v201
    %219 = vmatprep.subr.bf16.mxu0 0
    %220 = vmatpush1.bf16.msra.mxu0 %v203
    %221 = vmatprep.subr.bf16.mxu0 0
    %222 = vmatpush1.bf16.msra.mxu0 %v204
    %223 = vmatprep.subr.bf16.mxu0 0
    %224 = vmatpush1.bf16.msra.mxu0 %v205
    %225 = vmatprep.subr.bf16.mxu0 0
    %226 = vmatpush1.bf16.msra.mxu0 %v206
    %227 = vmatprep.subr.bf16.mxu0 0
    %228 = vmatpush1.bf16.msra.mxu0 %v207
    %229 = vmatprep.subr.bf16.mxu0 0
    %230 = vmatpush1.bf16.msra.mxu0 %v208
    %231 = vmatprep.subr.bf16.mxu0 0
    %232 = vmatpush1.bf16.msra.mxu0 %v209
    %233 = vmatprep.subr.bf16.mxu0 0
    %234 = vmatpush1.bf16.msra.mxu0 %v210
    %235 = vmatprep.subr.bf16.mxu0 0
    %236 = vmatpush1.bf16.msra.mxu0 0
    %237 = vmatprep.subr.bf16.mxu0 0
    %238 = vmatpush1.bf16.msra.mxu0 0
    %239 = vmatprep.subr.bf16.mxu0 0
    %240 = vmatpush1.bf16.msra.mxu0 0
    %241 = vmatprep.subr.bf16.mxu0 0
    %242 = vmatpush1.bf16.msra.mxu0 0
    %243 = vmatprep.subr.bf16.mxu0 0
    %244 = vmatpush1.bf16.msra.mxu0 0
    %245 = vmatprep.subr.bf16.mxu0 0
    %246 = vmatpush1.bf16.msra.mxu0 0
    %247 = vmatprep.subr.bf16.mxu0 0
    %248 = vmatpush1.bf16.msra.mxu0 0
    %249 = vmatprep.subr.bf16.mxu0 0
    %250 = vmatpush1.bf16.msra.mxu0 0
    %251 = vmatprep.mubr.bf16.mxu0 0
    %252 = vmatmul.mubr.bf16.gmra.mrb[0].mxu0 %v147
    %v253 = vpop.f32.mrb[0].mxu0
    %v254 = vadd.f32 %v169, %v253
    %v255 = vpop.f32.mrb[0].mxu0
    %v256 = vpop.f32.mrb[0].mxu0
    %v257 = vadd.f32 %v169, %v256
    %v258 = vpop.f32.mrb[0].mxu0
    %259 = vdwg.mxu0
    %v260 = vtanh.pop %v254
    %v261 = vtanh.pop %v257
    %v262 = vpack.c.bf16 %v261, %v260
    %v263 = vld [vmem:[#allocation3] sm:$0xf]
    %v264 = vld [vmem:[#allocation3 + $0x4] sm:$0xf]
    %v265 = vld [vmem:[#allocation3 + $0x8] sm:$0xf]
    %v266 = vld [vmem:[#allocation3 + $0xc] sm:$0xf]
    %v267 = vld [vmem:[#allocation3 + $0x10] sm:$0xf]
    %v268 = vld [vmem:[#allocation3 + $0x14] sm:$0xf]
    %v269 = vld [vmem:[#allocation3 + $0x18] sm:$0xf]
    %v270 = vld [vmem:[#allocation3 + $0x1c] sm:$0xf]
    %v271 = vld [vmem:[#allocation3 + $0x20] sm:$0xf]
    %v272 = vld [vmem:[#allocation3 + $0x24] sm:$0xf]
    %v273 = vld [vmem:[#allocation3 + $0x28] sm:$0xf]
    %v274 = vld [vmem:[#allocation3 + $0x2c] sm:$0xf]
    %v275 = vld [vmem:[#allocation3 + $0x30] sm:$0xf]
    %v276 = vld [vmem:[#allocation3 + $0x34] sm:$0xf]
    %v277 = vld [vmem:[#allocation3 + $0x38] sm:$0xf]
    %v278 = vld [vmem:[#allocation3 + $0x3c] sm:$0xf]
    %v279 = vld [vmem:[%s8] sm:$0x1]
    %v281 = vlaneseq
    %v282 = vshrl.u32 %v281, 7
    %v283 = vsub.s32 0, %v282
    %v284 = vrot.slane %v279, %v283
    %v302 = vunpack.c.l.b16 %v263
    %v303 = vunpack.c.l.b16 %v264
    %v304 = vunpack.c.l.b16 %v265
    %v305 = vunpack.c.l.b16 %v266
    %v306 = vunpack.c.l.b16 %v267
    %v307 = vunpack.c.l.b16 %v268
    %v308 = vunpack.c.l.b16 %v269
    %v309 = vunpack.c.l.b16 %v270
    %v310 = vunpack.c.l.b16 %v271
    %v311 = vunpack.c.l.b16 %v272
    %v312 = vunpack.c.l.b16 %v273
    %v313 = vunpack.c.l.b16 %v274
    %v314 = vunpack.c.l.b16 %v275
    %v315 = vunpack.c.l.b16 %v276
    %v316 = vunpack.c.l.b16 %v277
    %v317 = vunpack.c.l.b16 %v278
    %v318 = vpack.c.b16 %v303, %v302
    %v319 = vpack.c.b16 %v305, %v304
    %v320 = vpack.c.b16 %v307, %v306
    %v321 = vpack.c.b16 %v309, %v308
    %v322 = vpack.c.b16 %v311, %v310
    %v323 = vpack.c.b16 %v313, %v312
    %v324 = vpack.c.b16 %v315, %v314
    %v325 = vpack.c.b16 %v317, %v316
    %334 = vmatprep.subr.bf16.mxu0 0
    %335 = vmatpush1.bf16.msra.mxu0 %v318
    %336 = vmatprep.subr.bf16.mxu0 0
    %337 = vmatpush1.bf16.msra.mxu0 %v319
    %338 = vmatprep.subr.bf16.mxu0 0
    %339 = vmatpush1.bf16.msra.mxu0 %v320
    %340 = vmatprep.subr.bf16.mxu0 0
    %341 = vmatpush1.bf16.msra.mxu0 %v321
    %342 = vmatprep.subr.bf16.mxu0 0
    %343 = vmatpush1.bf16.msra.mxu0 %v322
    %344 = vmatprep.subr.bf16.mxu0 0
    %345 = vmatpush1.bf16.msra.mxu0 %v323
    %346 = vmatprep.subr.bf16.mxu0 0
    %347 = vmatpush1.bf16.msra.mxu0 %v324
    %348 = vmatprep.subr.bf16.mxu0 0
    %349 = vmatpush1.bf16.msra.mxu0 %v325
    %350 = vmatprep.subr.bf16.mxu0 0
    %351 = vmatpush1.bf16.msra.mxu0 0
    %352 = vmatprep.subr.bf16.mxu0 0
    %353 = vmatpush1.bf16.msra.mxu0 0
    %354 = vmatprep.subr.bf16.mxu0 0
    %355 = vmatpush1.bf16.msra.mxu0 0
    %356 = vmatprep.subr.bf16.mxu0 0
    %357 = vmatpush1.bf16.msra.mxu0 0
    %358 = vmatprep.subr.bf16.mxu0 0
    %359 = vmatpush1.bf16.msra.mxu0 0
    %360 = vmatprep.subr.bf16.mxu0 0
    %361 = vmatpush1.bf16.msra.mxu0 0
    %362 = vmatprep.subr.bf16.mxu0 0
    %363 = vmatpush1.bf16.msra.mxu0 0
    %364 = vmatprep.subr.bf16.mxu0 0
    %365 = vmatpush1.bf16.msra.mxu0 0
    %366 = vmatprep.mubr.bf16.mxu0 0
    %367 = vmatmul.mubr.bf16.gmra.mrb[0].mxu0 %v262
    %v368 = vpop.f32.mrb[0].mxu0
    %v369 = vadd.f32 %v284, %v368
    %v370 = vpop.f32.mrb[0].mxu0
    %v371 = vpop.f32.mrb[0].mxu0
    %v372 = vadd.f32 %v284, %v371
    %v373 = vpop.f32.mrb[0].mxu0
    %374 = vdwg.mxu0
    %v375 = vtanh.pop %v369
    %v376 = vtanh.pop %v372
    %v377 = vpack.c.bf16 %v376, %v375
    %v378 = vld [vmem:[%s9] sm:$0xf]
    %v379 = vld [vmem:[%s9 + $0x4] sm:$0xf]
    %v380 = vld [vmem:[%s9 + $0x8] sm:$0xf]
    %v381 = vld [vmem:[%s9 + $0xc] sm:$0xf]
    %v382 = vld [vmem:[%s9 + $0x10] sm:$0xf]
    %v383 = vld [vmem:[%s9 + $0x14] sm:$0xf]
    %v384 = vld [vmem:[%s9 + $0x18] sm:$0xf]
    %v385 = vld [vmem:[%s9 + $0x1c] sm:$0xf]
    %v386 = vld [vmem:[%s9 + $0x20] sm:$0xf]
    %v387 = vld [vmem:[%s9 + $0x24] sm:$0xf]
    %v388 = vld [vmem:[%s9 + $0x28] sm:$0xf]
    %v389 = vld [vmem:[%s9 + $0x2c] sm:$0xf]
    %v390 = vld [vmem:[%s9 + $0x30] sm:$0xf]
    %v391 = vld [vmem:[%s9 + $0x34] sm:$0xf]
    %v392 = vld [vmem:[%s9 + $0x38] sm:$0xf]
    %v393 = vld [vmem:[%s9 + $0x3c] sm:$0xf]
    %v394 = vld [vmem:[%s10] sm:$0x1]
    %v396 = vlaneseq
    %v397 = vshrl.u32 %v396, 7
    %v398 = vsub.s32 0, %v397
    %v399 = vrot.slane %v394, %v398
    %v417 = vunpack.c.l.b16 %v378
    %v418 = vunpack.c.l.b16 %v379
    %v419 = vunpack.c.l.b16 %v380
    %v420 = vunpack.c.l.b16 %v381
    %v421 = vunpack.c.l.b16 %v382
    %v422 = vunpack.c.l.b16 %v383
    %v423 = vunpack.c.l.b16 %v384
    %v424 = vunpack.c.l.b16 %v385
    %v425 = vunpack.c.l.b16 %v386
    %v426 = vunpack.c.l.b16 %v387
    %v427 = vunpack.c.l.b16 %v388
    %v428 = vunpack.c.l.b16 %v389
    %v429 = vunpack.c.l.b16 %v390
    %v430 = vunpack.c.l.b16 %v391
    %v431 = vunpack.c.l.b16 %v392
    %v432 = vunpack.c.l.b16 %v393
    %v433 = vpack.c.b16 %v418, %v417
    %v434 = vpack.c.b16 %v420, %v419
    %v435 = vpack.c.b16 %v422, %v421
    %v436 = vpack.c.b16 %v424, %v423
    %v437 = vpack.c.b16 %v426, %v425
    %v438 = vpack.c.b16 %v428, %v427
    %v439 = vpack.c.b16 %v430, %v429
    %v440 = vpack.c.b16 %v432, %v431
    %449 = vmatprep.subr.bf16.mxu0 0
    %450 = vmatpush1.bf16.msra.mxu0 %v433
    %451 = vmatprep.subr.bf16.mxu0 0
    %452 = vmatpush1.bf16.msra.mxu0 %v434
    %453 = vmatprep.subr.bf16.mxu0 0
    %454 = vmatpush1.bf16.msra.mxu0 %v435
    %455 = vmatprep.subr.bf16.mxu0 0
    %456 = vmatpush1.bf16.msra.mxu0 %v436
    %457 = vmatprep.subr.bf16.mxu0 0
    %458 = vmatpush1.bf16.msra.mxu0 %v437
    %459 = vmatprep.subr.bf16.mxu0 0
    %460 = vmatpush1.bf16.msra.mxu0 %v438
    %461 = vmatprep.subr.bf16.mxu0 0
    %462 = vmatpush1.bf16.msra.mxu0 %v439
    %463 = vmatprep.subr.bf16.mxu0 0
    %464 = vmatpush1.bf16.msra.mxu0 %v440
    %465 = vmatprep.subr.bf16.mxu0 0
    %466 = vmatpush1.bf16.msra.mxu0 0
    %467 = vmatprep.subr.bf16.mxu0 0
    %468 = vmatpush1.bf16.msra.mxu0 0
    %469 = vmatprep.subr.bf16.mxu0 0
    %470 = vmatpush1.bf16.msra.mxu0 0
    %471 = vmatprep.subr.bf16.mxu0 0
    %472 = vmatpush1.bf16.msra.mxu0 0
    %473 = vmatprep.subr.bf16.mxu0 0
    %474 = vmatpush1.bf16.msra.mxu0 0
    %475 = vmatprep.subr.bf16.mxu0 0
    %476 = vmatpush1.bf16.msra.mxu0 0
    %477 = vmatprep.subr.bf16.mxu0 0
    %478 = vmatpush1.bf16.msra.mxu0 0
    %479 = vmatprep.subr.bf16.mxu0 0
    %480 = vmatpush1.bf16.msra.mxu0 0
    %481 = vmatprep.mubr.bf16.mxu0 0
    %482 = vmatmul.mubr.bf16.gmra.mrb[0].mxu0 %v377
    %v483 = vpop.f32.mrb[0].mxu0
    %v484 = vadd.f32 %v399, %v483
    %v485 = vpop.f32.mrb[0].mxu0
    %v486 = vpop.f32.mrb[0].mxu0
    %v487 = vadd.f32 %v399, %v486
    %v488 = vpop.f32.mrb[0].mxu0
    %489 = vdwg.mxu0
    %vm490 = vcmask 31744
    %491 = vst.msk [vmem:[%s11] sm:$0xff] %vm490, %v484
    %492 = vst.msk [vmem:[%s11 + $0x8] sm:$0xff] %vm490, %v487
    // Predicated region
    $region50: #{tpu_custom_call.1} parent=1 // pred_check
      _
    $region51: #{tpu_custom_call.1} parent=1 // pred_check_branch
      %494 = sbr.rel (0) target = $region53
    $region52: #{tpu_custom_call.1} parent=1 // pred_region
      _
    $region53: #{tpu_custom_call.1} parent=1 // pred_fallthru
      _
    // Predicated region
    $region54: #{tpu_custom_call.1} parent=1 // pred_check
      _
    $region55: #{tpu_custom_call.1} parent=1 // pred_check_branch
      %496 = sbr.rel (0) target = $region57
    $region56: #{tpu_custom_call.1} parent=1 // pred_region
      _
    $region57: #{tpu_custom_call.1} parent=1 // pred_fallthru
      _
    %497 = vsyncpa [#allocation4], 1

</llo_original>
